<compile_context>
chip_gen: v7x
topology: tpu7x:2x2x1
jax: 0.10.0
libtpu: 0.0.40
codegen_flags: <defaults>
</compile_context>

<pallas_src>
import jax
import jax.numpy as jnp
from jax.experimental import pallas as pl
from jax.experimental.pallas import tpu as pltpu


def _round_up(n, m):
    return ((n + m - 1) // m) * m


def _qfunc_kernel(x_ref, a_ref, w1x_ref, w1a_ref, b1_ref, w2_ref, b2_ref,
                  w3_ref, b3_ref, o_ref):
    # ---- Layer 1: h = relu(x @ W1x + a @ W1a + b1) -------------------------
    # bf16 MXU inputs, f32 accumulation; elementwise stays f32 (v5e-safe).
    h = jnp.dot(x_ref[...].astype(jnp.bfloat16), w1x_ref[...],
                preferred_element_type=jnp.float32)
    h = h + jnp.dot(a_ref[...].astype(jnp.bfloat16), w1a_ref[...],
                    preferred_element_type=jnp.float32)
    h = jnp.maximum(h + b1_ref[...], 0.0)

    # ---- Layer 2: h = relu(h @ W2 + b2) ------------------------------------
    h = jnp.dot(h.astype(jnp.bfloat16), w2_ref[...],
                preferred_element_type=jnp.float32)
    h = jnp.maximum(h + b2_ref[...], 0.0)

    # ---- Output layer: q = h @ w3 + b3 as VPU multiply + lane reduce -------
    # (an N=1 MXU matmul would use <1% of the systolic array).
    q = jnp.sum(h * w3_ref[...], axis=-1) + b3_ref[0, 0]        # (TB,)
    o_ref[...] = q[None, :].astype(o_ref.dtype)                 # lane-dense (1, TB)


def single_model_state_action_q(x, a, params, *, batch_tile=128):
    """Forward pass of SingleModelStateActionQFunction with an MLP model."""
    w1, b1, w2, b2, w3, b3 = params
    B, obs_dim = x.shape
    act_dim = a.shape[1]
    hidden = w1.shape[1]

    # ---- Pad hidden to a lane multiple and batch to the tile size ----------
    Hp = _round_up(hidden, 128)
    TB = batch_tile                      # multiple of 8 (f32 sublane); 128 lanes
    Bp = _round_up(B, TB)
    n_tiles = Bp // TB
    ph = Hp - hidden

    # Split W1 so the (x, a) concat never materializes in HBM.
    w1x = w1[:obs_dim]
    w1a = w1[obs_dim:]

    # Weights feeding the MXU stored in bf16 (halves HBM/VMEM bytes);
    # bias / output-row vectors used on the VPU stay f32.
    w1x_p = jnp.pad(w1x, ((0, 0), (0, ph))).astype(jnp.bfloat16)
    w1a_p = jnp.pad(w1a, ((0, 0), (0, ph))).astype(jnp.bfloat16)
    w2_p = jnp.pad(w2, ((0, ph), (0, ph))).astype(jnp.bfloat16)
    b1_p = jnp.pad(b1.reshape(1, -1), ((0, 0), (0, ph))).astype(jnp.float32)
    b2_p = jnp.pad(b2.reshape(1, -1), ((0, 0), (0, ph))).astype(jnp.float32)
    w3_row = jnp.pad(w3.reshape(1, -1), ((0, 0), (0, ph))).astype(jnp.float32)
    b3_s = jnp.asarray(b3, jnp.float32).reshape(1, 1)

    x_p = jnp.pad(x.astype(jnp.float32), ((0, Bp - B), (0, 0)))
    a_p = jnp.pad(a.astype(jnp.float32), ((0, Bp - B), (0, 0)))

    const = lambda i: (0, 0)             # weights resident across batch tiles
    grid_spec = pltpu.PrefetchScalarGridSpec(
        num_scalar_prefetch=0,
        grid=(n_tiles,),
        in_specs=[
            pl.BlockSpec((TB, obs_dim), lambda i: (i, 0)),   # x tile
            pl.BlockSpec((TB, act_dim), lambda i: (i, 0)),   # a tile
            pl.BlockSpec(w1x_p.shape, const),
            pl.BlockSpec(w1a_p.shape, const),
            pl.BlockSpec(b1_p.shape, const),
            pl.BlockSpec(w2_p.shape, const),
            pl.BlockSpec(b2_p.shape, const),
            pl.BlockSpec(w3_row.shape, const),
            pl.BlockSpec(memory_space=pltpu.MemorySpace.SMEM),  # b3 scalar
        ],
        out_specs=pl.BlockSpec((1, TB), lambda i: (i, 0)),
    )

    flops = 2 * Bp * ((obs_dim + act_dim) * Hp + Hp * Hp + Hp)
    bytes_accessed = (
        (x_p.size + a_p.size) * 4
        + (w1x_p.size + w1a_p.size + w2_p.size) * 2
        + (b1_p.size + b2_p.size + w3_row.size + 1) * 4
        + Bp * 4
    )

    q_tiles = pl.pallas_call(
        _qfunc_kernel,
        out_shape=jax.ShapeDtypeStruct((n_tiles, TB), jnp.float32),
        grid_spec=grid_spec,
        compiler_params=pltpu.CompilerParams(
            dimension_semantics=("parallel",)),
        cost_estimate=pl.CostEstimate(
            flops=flops, transcendentals=0, bytes_accessed=bytes_accessed),
    )(x_p, a_p, w1x_p, w1a_p, b1_p, w2_p, b2_p, w3_row, b3_s)

    # Back to the module's (B, 1) output shape; drop padded rows.
    return q_tiles.reshape(Bp)[:B].reshape(B, 1)


def init_params(key, obs_dim, act_dim, hidden):
    k1, k2, k3 = jax.random.split(key, 3)
    in_dim = obs_dim + act_dim
    w1 = jax.random.normal(k1, (in_dim, hidden), jnp.float32) * 0.1
    b1 = jnp.zeros((1, hidden), jnp.float32)
    w2 = jax.random.normal(k2, (hidden, hidden), jnp.float32) * 0.1
    b2 = jnp.zeros((1, hidden), jnp.float32)
    w3 = jax.random.normal(k3, (hidden, 1), jnp.float32) * 0.1
    b3 = jnp.zeros((1, 1), jnp.float32)
    return (w1, b1, w2, b2, w3, b3)


if __name__ == "__main__":
    key = jax.random.PRNGKey(0)
    k_x, k_a, k_p = jax.random.split(key, 3)

    B, OBS, ACT, HIDDEN = 8, 16, 8, 32
    x = jax.random.normal(k_x, (B, OBS), jnp.float32)
    a = jax.random.normal(k_a, (B, ACT), jnp.float32)
    params = init_params(k_p, OBS, ACT, HIDDEN)

    q = single_model_state_action_q(x, a, params)
    q = jax.block_until_ready(q)

    # Pure-JAX f32 reference (matches the PyTorch module semantics).
    w1, b1, w2, b2, w3, b3 = params
    xa = jnp.concatenate([x, a], axis=1)
    h = jnp.maximum(xa @ w1 + b1, 0.0)
    h = jnp.maximum(h @ w2 + b2, 0.0)
    q_ref = h @ w3 + b3

    assert q.shape == (B, 1)
    # bf16 MXU inputs with f32 accumulation -> slightly loosened tolerance.
    assert jnp.allclose(q, q_ref, atol=3e-2, rtol=3e-2), (q, q_ref)

    print("KERNEL_OK")
</pallas_src>

<mosaic_0001>
module attributes {stable_mosaic.version = 11 : i64} {
  func.func @_qfunc_kernel(%arg0: i32, %arg1: memref<128x16xf32, #tpu.memory_space<vmem>>, %arg2: memref<128x8xf32, #tpu.memory_space<vmem>>, %arg3: memref<16x128xbf16, #tpu.memory_space<vmem>>, %arg4: memref<8x128xbf16, #tpu.memory_space<vmem>>, %arg5: memref<1x128xf32, #tpu.memory_space<vmem>>, %arg6: memref<128x128xbf16, #tpu.memory_space<vmem>>, %arg7: memref<1x128xf32, #tpu.memory_space<vmem>>, %arg8: memref<1x128xf32, #tpu.memory_space<vmem>>, %arg9: memref<1x1xf32, #tpu.memory_space<smem>>, %arg10: memref<1x128xf32, #tpu.memory_space<vmem>>) attributes {dimension_semantics = [#tpu.dimension_semantics<parallel>], iteration_bounds = array<i64: 1>, scalar_prefetch = 0 : i64, scratch_operands = 0 : i64, tpu.core_type = #tpu.core_type<tc>, window_params = [{transform_indices = @transform_0, window_bounds = array<i64: 128, 16>}, {transform_indices = @transform_1, window_bounds = array<i64: 128, 8>}, {pipeline_mode = #tpu.pipeline_mode<synchronous>, transform_indices = @transform_2, window_bounds = array<i64: 16, 128>}, {pipeline_mode = #tpu.pipeline_mode<synchronous>, transform_indices = @transform_3, window_bounds = array<i64: 8, 128>}, {pipeline_mode = #tpu.pipeline_mode<synchronous>, transform_indices = @transform_4, window_bounds = array<i64: 1, 128>}, {pipeline_mode = #tpu.pipeline_mode<synchronous>, transform_indices = @transform_5, window_bounds = array<i64: 128, 128>}, {pipeline_mode = #tpu.pipeline_mode<synchronous>, transform_indices = @transform_6, window_bounds = array<i64: 1, 128>}, {pipeline_mode = #tpu.pipeline_mode<synchronous>, transform_indices = @transform_7, window_bounds = array<i64: 1, 128>}, {transform_indices = @transform_8, window_bounds = array<i64: 1, 1>}, {transform_indices = @transform_9, window_bounds = array<i64: 1, 128>}]} {
    %c0 = arith.constant 0 : index
    %c0_0 = arith.constant 0 : index
    %0 = vector.load %arg1[%c0, %c0_0] : memref<128x16xf32, #tpu.memory_space<vmem>>, vector<128x16xf32>
    %1 = arith.truncf %0 : vector<128x16xf32> to vector<128x16xbf16>
    %c0_1 = arith.constant 0 : index
    %c0_2 = arith.constant 0 : index
    %2 = vector.load %arg3[%c0_1, %c0_2] : memref<16x128xbf16, #tpu.memory_space<vmem>>, vector<16x128xbf16>
    %cst = arith.constant dense<0.000000e+00> : vector<128x128xf32>
    %3 = tpu.matmul %1, %2, %cst {dimension_numbers = #tpu.dot_dimension_numbers<[1], [0], [0], [1], [0, 0, 1, 1], [], []>} : vector<128x16xbf16>, vector<16x128xbf16>, vector<128x128xf32> -> vector<128x128xf32>
    %c0_3 = arith.constant 0 : index
    %c0_4 = arith.constant 0 : index
    %4 = vector.load %arg2[%c0_3, %c0_4] : memref<128x8xf32, #tpu.memory_space<vmem>>, vector<128x8xf32>
    %5 = arith.truncf %4 : vector<128x8xf32> to vector<128x8xbf16>
    %c0_5 = arith.constant 0 : index
    %c0_6 = arith.constant 0 : index
    %6 = vector.load %arg4[%c0_5, %c0_6] : memref<8x128xbf16, #tpu.memory_space<vmem>>, vector<8x128xbf16>
    %cst_7 = arith.constant dense<0.000000e+00> : vector<128x128xf32>
    %7 = tpu.matmul %5, %6, %cst_7 {dimension_numbers = #tpu.dot_dimension_numbers<[1], [0], [0], [1], [0, 0, 1, 1], [], []>} : vector<128x8xbf16>, vector<8x128xbf16>, vector<128x128xf32> -> vector<128x128xf32>
    %8 = arith.addf %3, %7 : vector<128x128xf32>
    %c0_8 = arith.constant 0 : index
    %c0_9 = arith.constant 0 : index
    %9 = vector.load %arg5[%c0_8, %c0_9] : memref<1x128xf32, #tpu.memory_space<vmem>>, vector<1x128xf32>
    %10 = vector.broadcast %9 : vector<1x128xf32> to vector<128x128xf32>
    %11 = arith.addf %8, %10 : vector<128x128xf32>
    %cst_10 = arith.constant 0.000000e+00 : f32
    %12 = vector.broadcast %cst_10 : f32 to vector<128x128xf32>
    %13 = arith.maximumf %11, %12 : vector<128x128xf32>
    %14 = arith.truncf %13 : vector<128x128xf32> to vector<128x128xbf16>
    %c0_11 = arith.constant 0 : index
    %c0_12 = arith.constant 0 : index
    %15 = vector.load %arg6[%c0_11, %c0_12] : memref<128x128xbf16, #tpu.memory_space<vmem>>, vector<128x128xbf16>
    %cst_13 = arith.constant dense<0.000000e+00> : vector<128x128xf32>
    %16 = tpu.matmul %14, %15, %cst_13 {dimension_numbers = #tpu.dot_dimension_numbers<[1], [0], [0], [1], [0, 0, 1, 1], [], []>} : vector<128x128xbf16>, vector<128x128xbf16>, vector<128x128xf32> -> vector<128x128xf32>
    %c0_14 = arith.constant 0 : index
    %c0_15 = arith.constant 0 : index
    %17 = vector.load %arg7[%c0_14, %c0_15] : memref<1x128xf32, #tpu.memory_space<vmem>>, vector<1x128xf32>
    %18 = vector.broadcast %17 : vector<1x128xf32> to vector<128x128xf32>
    %19 = arith.addf %16, %18 : vector<128x128xf32>
    %cst_16 = arith.constant 0.000000e+00 : f32
    %20 = vector.broadcast %cst_16 : f32 to vector<128x128xf32>
    %21 = arith.maximumf %19, %20 : vector<128x128xf32>
    %c0_17 = arith.constant 0 : index
    %c0_18 = arith.constant 0 : index
    %22 = vector.load %arg8[%c0_17, %c0_18] : memref<1x128xf32, #tpu.memory_space<vmem>>, vector<1x128xf32>
    %23 = vector.broadcast %22 : vector<1x128xf32> to vector<128x128xf32>
    %24 = arith.mulf %21, %23 : vector<128x128xf32>
    %cst_19 = arith.constant dense<0.000000e+00> : vector<128xf32>
    %25 = vector.multi_reduction <add>, %24, %cst_19 [1] : vector<128x128xf32> to vector<128xf32>
    %c0_20 = arith.constant 0 : index
    %c0_21 = arith.constant 0 : index
    %26 = memref.load %arg9[%c0_20, %c0_21] : memref<1x1xf32, #tpu.memory_space<smem>>
    %27 = vector.broadcast %26 : f32 to vector<128xf32>
    %28 = arith.addf %25, %27 : vector<128xf32>
    %29 = vector.shape_cast %28 : vector<128xf32> to vector<1x128xf32>
    %c0_22 = arith.constant 0 : index
    %c0_23 = arith.constant 0 : index
    %30 = vector.load %arg10[%c0_22, %c0_23] : memref<1x128xf32, #tpu.memory_space<vmem>>, vector<1x128xf32>
    tpu.vector_store %arg10[%c0_22, %c0_23], %29 {strides = array<i32>} : memref<1x128xf32, #tpu.memory_space<vmem>>, vector<1x128xf32>,
    return
  }
  func.func @transform_0(%arg0: i32) -> (i32, i32) {
    %c0_i32 = arith.constant 0 : i32
    %c0_i32_0 = arith.constant 0 : i32
    return %arg0, %c0_i32 : i32, i32
  }
  func.func @transform_1(%arg0: i32) -> (i32, i32) {
    %c0_i32 = arith.constant 0 : i32
    %c0_i32_0 = arith.constant 0 : i32
    return %arg0, %c0_i32 : i32, i32
  }
  func.func @transform_2(%arg0: i32) -> (i32, i32) {
    %c0_i32 = arith.constant 0 : i32
    %c0_i32_0 = arith.constant 0 : i32
    %c0_i32_1 = arith.constant 0 : i32
    return %c0_i32, %c0_i32_0 : i32, i32
  }
  func.func @transform_3(%arg0: i32) -> (i32, i32) {
    %c0_i32 = arith.constant 0 : i32
    %c0_i32_0 = arith.constant 0 : i32
    %c0_i32_1 = arith.constant 0 : i32
    return %c0_i32, %c0_i32_0 : i32, i32
  }
  func.func @transform_4(%arg0: i32) -> (i32, i32) {
    %c0_i32 = arith.constant 0 : i32
    %c0_i32_0 = arith.constant 0 : i32
    %c0_i32_1 = arith.constant 0 : i32
    return %c0_i32, %c0_i32_0 : i32, i32
  }
  func.func @transform_5(%arg0: i32) -> (i32, i32) {
    %c0_i32 = arith.constant 0 : i32
    %c0_i32_0 = arith.constant 0 : i32
    %c0_i32_1 = arith.constant 0 : i32
    return %c0_i32, %c0_i32_0 : i32, i32
  }
  func.func @transform_6(%arg0: i32) -> (i32, i32) {
    %c0_i32 = arith.constant 0 : i32
    %c0_i32_0 = arith.constant 0 : i32
    %c0_i32_1 = arith.constant 0 : i32
    return %c0_i32, %c0_i32_0 : i32, i32
  }
  func.func @transform_7(%arg0: i32) -> (i32, i32) {
    %c0_i32 = arith.constant 0 : i32
    %c0_i32_0 = arith.constant 0 : i32
    %c0_i32_1 = arith.constant 0 : i32
    return %c0_i32, %c0_i32_0 : i32, i32
  }
  func.func @transform_8(%arg0: i32) -> (i32, i32) {
    %c0_i32 = arith.constant 0 : i32
    %c0_i32_0 = arith.constant 0 : i32
    %c0_i32_1 = arith.constant 0 : i32
    return %c0_i32, %c0_i32_0 : i32, i32
  }
  func.func @transform_9(%arg0: i32) -> (i32, i32) {
    %c0_i32 = arith.constant 0 : i32
    %c0_i32_0 = arith.constant 0 : i32
    return %arg0, %c0_i32 : i32, i32
  }
}

</mosaic_0001>

<llo_original>
// kernel: tpu_custom_call.1
$region0: #{tpu_custom_call.1}
  #allocation0 [shape = 'u32[]', space=smem, size = 0x4, offset = 0x4, fixed_abs, tag = 'smem constant byte address 0x4 - core index']
  #allocation1 [shape = 'u32[144,128]{1,0:T(1,128)}', space=vmem, size = 0x12000, scoped, tag = 'internal scratch']
  #allocation2 [shape = 'f32[1,1]{1,0:T(1,128)S(6)}', space=smem, size = 0x200, scoped, tag = 'scoped memory for tpu_custom_call.1']
  %s0 = inlined_call_operand.vmem [shape: f32[128,16], index: 0, kind: input, shape index: {}]
  %s1 = inlined_call_operand.vmem [shape: f32[128,8], index: 1, kind: input, shape index: {}]
  %s2 = inlined_call_operand.vmem [shape: bf16[16,128], index: 2, kind: input, shape index: {}]
  %s3 = inlined_call_operand.vmem [shape: bf16[8,128], index: 3, kind: input, shape index: {}]
  %s4 = inlined_call_operand.vmem [shape: f32[1,128], index: 4, kind: input, shape index: {}]
  %s5 = inlined_call_operand.vmem [shape: bf16[128,128], index: 5, kind: input, shape index: {}]
  %s6 = inlined_call_operand.vmem [shape: f32[1,128], index: 6, kind: input, shape index: {}]
  %s7 = inlined_call_operand.vmem [shape: f32[1,128], index: 7, kind: input, shape index: {}]
  %s8 = inlined_call_operand.<no memory space> [shape: f32[1,1], index: 8, kind: input, shape index: {}]
  %s9 = inlined_call_operand.hbm [shape: f32[1,128], index: 9, kind: output, shape index: {}]
  %s10 = sld [smem:[#allocation0]]
  $region46: #{tpu_custom_call.1} parent=0
    _
  %s12 = ssub.s32 1, %s10
  %s13 = scalar_select 0, %s12, %s10
  %14 = sst [smem:[#allocation2]] %s8
  $region1: #{tpu_custom_call.1} parent=0
    #allocation3 [shape = 'u8[512]{0}', space=vmem, size = 0x400, scoped, tag = 'output window, operand 0, single buffered']
    #allocation4 [shape = 's32[1]{0}', space=sflag, size = 0x4, scoped, tag = 'scoped memory for tpu_custom_call.1']
    %15 = vsyncpa [#allocation4], 0
    // Predicated region
    $region2: #{tpu_custom_call.1} parent=1 // pred_check
      _
    $region3: #{tpu_custom_call.1} parent=1 // pred_check_branch
      %17 = sbr.rel (0) target = $region5
    $region4: #{tpu_custom_call.1} parent=1 // pred_region
      _
    $region5: #{tpu_custom_call.1} parent=1 // pred_fallthru
      _
    // Predicated region
    $region6: #{tpu_custom_call.1} parent=1 // pred_check
      _
    $region7: #{tpu_custom_call.1} parent=1 // pred_check_branch
      %19 = sbr.rel (0) target = $region9
    $region8: #{tpu_custom_call.1} parent=1 // pred_region
      _
    $region9: #{tpu_custom_call.1} parent=1 // pred_fallthru
      _
    // Predicated region
    $region10: #{tpu_custom_call.1} parent=1 // pred_check
      _
    $region11: #{tpu_custom_call.1} parent=1 // pred_check_branch
      %21 = sbr.rel (0) target = $region13
    $region12: #{tpu_custom_call.1} parent=1 // pred_region
      _
    $region13: #{tpu_custom_call.1} parent=1 // pred_fallthru
      _
    // Predicated region
    $region14: #{tpu_custom_call.1} parent=1 // pred_check
      _
    $region15: #{tpu_custom_call.1} parent=1 // pred_check_branch
      %23 = sbr.rel (0) target = $region17
    $region16: #{tpu_custom_call.1} parent=1 // pred_region
      _
    $region17: #{tpu_custom_call.1} parent=1 // pred_fallthru
      _
    // Predicated region
    $region18: #{tpu_custom_call.1} parent=1 // pred_check
      _
    $region19: #{tpu_custom_call.1} parent=1 // pred_check_branch
      %25 = sbr.rel (0) target = $region21
    $region20: #{tpu_custom_call.1} parent=1 // pred_region
      _
    $region21: #{tpu_custom_call.1} parent=1 // pred_fallthru
      _
    // Predicated region
    $region22: #{tpu_custom_call.1} parent=1 // pred_check
      _
    $region23: #{tpu_custom_call.1} parent=1 // pred_check_branch
      %27 = sbr.rel (0) target = $region25
    $region24: #{tpu_custom_call.1} parent=1 // pred_region
      _
    $region25: #{tpu_custom_call.1} parent=1 // pred_fallthru
      _
    // Predicated region
    $region26: #{tpu_custom_call.1} parent=1 // pred_check
      _
    $region27: #{tpu_custom_call.1} parent=1 // pred_check_branch
      %29 = sbr.rel (0) target = $region29
    $region28: #{tpu_custom_call.1} parent=1 // pred_region
      _
    $region29: #{tpu_custom_call.1} parent=1 // pred_fallthru
      _
    // Predicated region
    $region30: #{tpu_custom_call.1} parent=1 // pred_check
      _
    $region31: #{tpu_custom_call.1} parent=1 // pred_check_branch
      %31 = sbr.rel (0) target = $region33
    $region32: #{tpu_custom_call.1} parent=1 // pred_region
      _
    $region33: #{tpu_custom_call.1} parent=1 // pred_fallthru
      _
    // Predicated region
    $region34: #{tpu_custom_call.1} parent=1 // pred_check
      _
    $region35: #{tpu_custom_call.1} parent=1 // pred_check_branch
      %33 = sbr.rel (0) target = $region37
    $region36: #{tpu_custom_call.1} parent=1 // pred_region
      _
    $region37: #{tpu_custom_call.1} parent=1 // pred_fallthru
      _
    %v35 = vld [vmem:[%s0] sm:$0xff]
    %v36 = vld [vmem:[%s0 + $0x8] sm:$0xff]
    %v37 = vld [vmem:[%s0 + $0x10] sm:$0xff]
    %v38 = vld [vmem:[%s0 + $0x18] sm:$0xff]
    %v39 = vld [vmem:[%s0 + $0x20] sm:$0xff]
    %v40 = vld [vmem:[%s0 + $0x28] sm:$0xff]
    %v41 = vld [vmem:[%s0 + $0x30] sm:$0xff]
    %v42 = vld [vmem:[%s0 + $0x38] sm:$0xff]
    %v43 = vld [vmem:[%s0 + $0x40] sm:$0xff]
    %v44 = vld [vmem:[%s0 + $0x48] sm:$0xff]
    %v45 = vld [vmem:[%s0 + $0x50] sm:$0xff]
    %v46 = vld [vmem:[%s0 + $0x58] sm:$0xff]
    %v47 = vld [vmem:[%s0 + $0x60] sm:$0xff]
    %v48 = vld [vmem:[%s0 + $0x68] sm:$0xff]
    %v49 = vld [vmem:[%s0 + $0x70] sm:$0xff]
    %v50 = vld [vmem:[%s0 + $0x78] sm:$0xff]
    %v51 = vpack.c.bf16 %v36, %v35
    %v52 = vpack.c.bf16 %v38, %v37
    %v53 = vpack.c.bf16 %v40, %v39
    %v54 = vpack.c.bf16 %v42, %v41
    %v55 = vpack.c.bf16 %v44, %v43
    %v56 = vpack.c.bf16 %v46, %v45
    %v57 = vpack.c.bf16 %v48, %v47
    %v58 = vpack.c.bf16 %v50, %v49
    %v59 = vld [vmem:[%s2] sm:$0xf]
    %v60 = vld [vmem:[%s2 + $0x4] sm:$0xf]
    %v61 = vld [vmem:[%s1] sm:$0xff]
    %v62 = vld [vmem:[%s1 + $0x8] sm:$0xff]
    %v63 = vld [vmem:[%s1 + $0x10] sm:$0xff]
    %v64 = vld [vmem:[%s1 + $0x18] sm:$0xff]
    %v65 = vld [vmem:[%s1 + $0x20] sm:$0xff]
    %v66 = vld [vmem:[%s1 + $0x28] sm:$0xff]
    %v67 = vld [vmem:[%s1 + $0x30] sm:$0xff]
    %v68 = vld [vmem:[%s1 + $0x38] sm:$0xff]
    %v69 = vld [vmem:[%s1 + $0x40] sm:$0xff]
    %v70 = vld [vmem:[%s1 + $0x48] sm:$0xff]
    %v71 = vld [vmem:[%s1 + $0x50] sm:$0xff]
    %v72 = vld [vmem:[%s1 + $0x58] sm:$0xff]
    %v73 = vld [vmem:[%s1 + $0x60] sm:$0xff]
    %v74 = vld [vmem:[%s1 + $0x68] sm:$0xff]
    %v75 = vld [vmem:[%s1 + $0x70] sm:$0xff]
    %v76 = vld [vmem:[%s1 + $0x78] sm:$0xff]
    %v77 = vpack.c.bf16 %v62, %v61
    %v78 = vpack.c.bf16 %v64, %v63
    %v79 = vpack.c.bf16 %v66, %v65
    %v80 = vpack.c.bf16 %v68, %v67
    %v81 = vpack.c.bf16 %v70, %v69
    %v82 = vpack.c.bf16 %v72, %v71
    %v83 = vpack.c.bf16 %v74, %v73
    %v84 = vpack.c.bf16 %v76, %v75
    %v85 = vld [vmem:[%s3] sm:$0xf]
    %vm86 = vcmask 64512
    %v88 = vsel %vm86, %v77, 0
    %v91 = vsel %vm86, %v78, 0
    %v94 = vsel %vm86, %v79, 0
    %v97 = vsel %vm86, %v80, 0
    %v100 = vsel %vm86, %v81, 0
    %v103 = vsel %vm86, %v82, 0
    %v106 = vsel %vm86, %v83, 0
    %v109 = vsel %vm86, %v84, 0
    %vm111 = vcmask 1043456
    %v113 = vsel %vm111, %v85, 0
    %115 = vmatprep.subr.bf16.mxu0 0
    %116 = vmatpush1.bf16.msra.mxu0 %v113
    %117 = vmatprep.subr.bf16.mxu0 0
    %118 = vmatpush1.bf16.msra.mxu0 0
    %119 = vmatprep.subr.bf16.mxu0 0
    %120 = vmatpush1.bf16.msra.mxu0 0
    %121 = vmatprep.subr.bf16.mxu0 0
    %122 = vmatpush1.bf16.msra.mxu0 0
    %123 = vmatprep.subr.bf16.mxu0 0
    %124 = vmatpush1.bf16.msra.mxu0 0
    %125 = vmatprep.subr.bf16.mxu0 0
    %126 = vmatpush1.bf16.msra.mxu0 0
    %127 = vmatprep.subr.bf16.mxu0 0
    %128 = vmatpush1.bf16.msra.mxu0 0
    %129 = vmatprep.subr.bf16.mxu0 0
    %130 = vmatpush1.bf16.msra.mxu0 0
    %131 = vmatprep.subr.bf16.mxu0 0
    %132 = vmatpush1.bf16.msra.mxu0 0
    %133 = vmatprep.subr.bf16.mxu0 0
    %134 = vmatpush1.bf16.msra.mxu0 0
    %135 = vmatprep.subr.bf16.mxu0 0
    %136 = vmatpush1.bf16.msra.mxu0 0
    %137 = vmatprep.subr.bf16.mxu0 0
    %138 = vmatpush1.bf16.msra.mxu0 0
    %139 = vmatprep.subr.bf16.mxu0 0
    %140 = vmatpush1.bf16.msra.mxu0 0
    %141 = vmatprep.subr.bf16.mxu0 0
    %142 = vmatpush1.bf16.msra.mxu0 0
    %143 = vmatprep.subr.bf16.mxu0 0
    %144 = vmatpush1.bf16.msra.mxu0 0
    %145 = vmatprep.subr.bf16.mxu0 0
    %146 = vmatpush1.bf16.msra.mxu0 0
    %147 = vmatprep.mubr.bf16.mxu0 0
    %148 = vmatmul.mubr.bf16.gmra.mrb[0].mxu0 %v88
    %v149 = vpop.f32.mrb[0].mxu0
    %v150 = vadd.f32 0.0, %v149
    %v151 = vpop.f32.mrb[0].mxu0
    %v152 = vpop.f32.mrb[0].mxu0
    %v153 = vadd.f32 0.0, %v152
    %v154 = vpop.f32.mrb[0].mxu0
    %155 = vmatprep.mubr.bf16.mxu0 0
    %156 = vmatmul.mubr.bf16.gmra.mrb[0].mxu0 %v91
    %v157 = vpop.f32.mrb[0].mxu0
    %v158 = vadd.f32 0.0, %v157
    %v159 = vpop.f32.mrb[0].mxu0
    %v160 = vpop.f32.mrb[0].mxu0
    %v161 = vadd.f32 0.0, %v160
    %v162 = vpop.f32.mrb[0].mxu0
    %163 = vmatprep.mubr.bf16.mxu0 0
    %164 = vmatmul.mubr.bf16.gmra.mrb[0].mxu0 %v94
    %v165 = vpop.f32.mrb[0].mxu0
    %v166 = vadd.f32 0.0, %v165
    %v167 = vpop.f32.mrb[0].mxu0
    %v168 = vpop.f32.mrb[0].mxu0
    %v169 = vadd.f32 0.0, %v168
    %v170 = vpop.f32.mrb[0].mxu0
    %171 = vmatprep.mubr.bf16.mxu0 0
    %172 = vmatmul.mubr.bf16.gmra.mrb[0].mxu0 %v97
    %v173 = vpop.f32.mrb[0].mxu0
    %v174 = vadd.f32 0.0, %v173
    %v175 = vpop.f32.mrb[0].mxu0
    %v176 = vpop.f32.mrb[0].mxu0
    %v177 = vadd.f32 0.0, %v176
    %v178 = vpop.f32.mrb[0].mxu0
    %179 = vmatprep.mubr.bf16.mxu0 0
    %180 = vmatmul.mubr.bf16.gmra.mrb[0].mxu0 %v100
    %v181 = vpop.f32.mrb[0].mxu0
    %v182 = vadd.f32 0.0, %v181
    %v183 = vpop.f32.mrb[0].mxu0
    %v184 = vpop.f32.mrb[0].mxu0
    %v185 = vadd.f32 0.0, %v184
    %v186 = vpop.f32.mrb[0].mxu0
    %187 = vmatprep.mubr.bf16.mxu0 0
    %188 = vmatmul.mubr.bf16.gmra.mrb[0].mxu0 %v103
    %v189 = vpop.f32.mrb[0].mxu0
    %v190 = vadd.f32 0.0, %v189
    %v191 = vpop.f32.mrb[0].mxu0
    %v192 = vpop.f32.mrb[0].mxu0
    %v193 = vadd.f32 0.0, %v192
    %v194 = vpop.f32.mrb[0].mxu0
    %195 = vmatprep.mubr.bf16.mxu0 0
    %196 = vmatmul.mubr.bf16.gmra.mrb[0].mxu0 %v106
    %v197 = vpop.f32.mrb[0].mxu0
    %v198 = vadd.f32 0.0, %v197
    %v199 = vpop.f32.mrb[0].mxu0
    %v200 = vpop.f32.mrb[0].mxu0
    %v201 = vadd.f32 0.0, %v200
    %v202 = vpop.f32.mrb[0].mxu0
    %203 = vmatprep.mubr.bf16.mxu0 0
    %204 = vmatmul.mubr.bf16.gmra.mrb[0].mxu0 %v109
    %v205 = vpop.f32.mrb[0].mxu0
    %v206 = vadd.f32 0.0, %v205
    %v207 = vpop.f32.mrb[0].mxu0
    %v208 = vpop.f32.mrb[0].mxu0
    %v209 = vadd.f32 0.0, %v208
    %v210 = vpop.f32.mrb[0].mxu0
    %211 = vdwg.mxu0
    %v214 = vunpack.c.l.b16 %v59
    %v215 = vunpack.c.l.b16 %v60
    %v216 = vpack.c.b16 %v215, %v214
    %vm218 = vcmask 130048
    %v220 = vsel %vm218, %v51, 0
    %v223 = vsel %vm218, %v52, 0
    %v226 = vsel %vm218, %v53, 0
    %v229 = vsel %vm218, %v54, 0
    %v232 = vsel %vm218, %v55, 0
    %v235 = vsel %vm218, %v56, 0
    %v238 = vsel %vm218, %v57, 0
    %v241 = vsel %vm218, %v58, 0
    %243 = vmatprep.subr.bf16.mxu0 0
    %244 = vmatpush1.bf16.msra.mxu0 %v216
    %245 = vmatprep.subr.bf16.mxu0 0
    %246 = vmatpush1.bf16.msra.mxu0 0
    %247 = vmatprep.subr.bf16.mxu0 0
    %248 = vmatpush1.bf16.msra.mxu0 0
    %249 = vmatprep.subr.bf16.mxu0 0
    %250 = vmatpush1.bf16.msra.mxu0 0
    %251 = vmatprep.subr.bf16.mxu0 0
    %252 = vmatpush1.bf16.msra.mxu0 0
    %253 = vmatprep.subr.bf16.mxu0 0
    %254 = vmatpush1.bf16.msra.mxu0 0
    %255 = vmatprep.subr.bf16.mxu0 0
    %256 = vmatpush1.bf16.msra.mxu0 0
    %257 = vmatprep.subr.bf16.mxu0 0
    %258 = vmatpush1.bf16.msra.mxu0 0
    %259 = vmatprep.subr.bf16.mxu0 0
    %260 = vmatpush1.bf16.msra.mxu0 0
    %261 = vmatprep.subr.bf16.mxu0 0
    %262 = vmatpush1.bf16.msra.mxu0 0
    %263 = vmatprep.subr.bf16.mxu0 0
    %264 = vmatpush1.bf16.msra.mxu0 0
    %265 = vmatprep.subr.bf16.mxu0 0
    %266 = vmatpush1.bf16.msra.mxu0 0
    %267 = vmatprep.subr.bf16.mxu0 0
    %268 = vmatpush1.bf16.msra.mxu0 0
    %269 = vmatprep.subr.bf16.mxu0 0
    %270 = vmatpush1.bf16.msra.mxu0 0
    %271 = vmatprep.subr.bf16.mxu0 0
    %272 = vmatpush1.bf16.msra.mxu0 0
    %273 = vmatprep.subr.bf16.mxu0 0
    %274 = vmatpush1.bf16.msra.mxu0 0
    %275 = vmatprep.mubr.bf16.mxu0 0
    %276 = vmatmul.mubr.bf16.gmra.mrb[0].mxu0 %v220
    %v277 = vpop.f32.mrb[0].mxu0
    %v278 = vadd.f32 %v150, %v277
    %v279 = vpop.f32.mrb[0].mxu0
    %v280 = vpop.f32.mrb[0].mxu0
    %v281 = vadd.f32 %v153, %v280
    %v282 = vpop.f32.mrb[0].mxu0
    %283 = vmatprep.mubr.bf16.mxu0 0
    %284 = vmatmul.mubr.bf16.gmra.mrb[0].mxu0 %v223
    %v285 = vpop.f32.mrb[0].mxu0
    %v286 = vadd.f32 %v158, %v285
    %v287 = vpop.f32.mrb[0].mxu0
    %v288 = vpop.f32.mrb[0].mxu0
    %v289 = vadd.f32 %v161, %v288
    %v290 = vpop.f32.mrb[0].mxu0
    %291 = vmatprep.mubr.bf16.mxu0 0
    %292 = vmatmul.mubr.bf16.gmra.mrb[0].mxu0 %v226
    %v293 = vpop.f32.mrb[0].mxu0
    %v294 = vadd.f32 %v166, %v293
    %v295 = vpop.f32.mrb[0].mxu0
    %v296 = vpop.f32.mrb[0].mxu0
    %v297 = vadd.f32 %v169, %v296
    %v298 = vpop.f32.mrb[0].mxu0
    %299 = vmatprep.mubr.bf16.mxu0 0
    %300 = vmatmul.mubr.bf16.gmra.mrb[0].mxu0 %v229
    %v301 = vpop.f32.mrb[0].mxu0
    %v302 = vadd.f32 %v174, %v301
    %v303 = vpop.f32.mrb[0].mxu0
    %v304 = vpop.f32.mrb[0].mxu0
    %v305 = vadd.f32 %v177, %v304
    %v306 = vpop.f32.mrb[0].mxu0
    %307 = vmatprep.mubr.bf16.mxu0 0
    %308 = vmatmul.mubr.bf16.gmra.mrb[0].mxu0 %v232
    %v309 = vpop.f32.mrb[0].mxu0
    %v310 = vadd.f32 %v182, %v309
    %v311 = vpop.f32.mrb[0].mxu0
    %v312 = vpop.f32.mrb[0].mxu0
    %v313 = vadd.f32 %v185, %v312
    %v314 = vpop.f32.mrb[0].mxu0
    %315 = vmatprep.mubr.bf16.mxu0 0
    %316 = vmatmul.mubr.bf16.gmra.mrb[0].mxu0 %v235
    %v317 = vpop.f32.mrb[0].mxu0
    %v318 = vadd.f32 %v190, %v317
    %v319 = vpop.f32.mrb[0].mxu0
    %v320 = vpop.f32.mrb[0].mxu0
    %v321 = vadd.f32 %v193, %v320
    %v322 = vpop.f32.mrb[0].mxu0
    %323 = vmatprep.mubr.bf16.mxu0 0
    %324 = vmatmul.mubr.bf16.gmra.mrb[0].mxu0 %v238
    %v325 = vpop.f32.mrb[0].mxu0
    %v326 = vadd.f32 %v198, %v325
    %v327 = vpop.f32.mrb[0].mxu0
    %v328 = vpop.f32.mrb[0].mxu0
    %v329 = vadd.f32 %v201, %v328
    %v330 = vpop.f32.mrb[0].mxu0
    %331 = vmatprep.mubr.bf16.mxu0 0
    %332 = vmatmul.mubr.bf16.gmra.mrb[0].mxu0 %v241
    %v333 = vpop.f32.mrb[0].mxu0
    %v334 = vadd.f32 %v206, %v333
    %v335 = vpop.f32.mrb[0].mxu0
    %v336 = vpop.f32.mrb[0].mxu0
    %v337 = vadd.f32 %v209, %v336
    %v338 = vpop.f32.mrb[0].mxu0
    %339 = vdwg.mxu0
    %v340 = vld [vmem:[%s4] sm:$0x1]
    %v342 = vlaneseq
    %v343 = vshrl.u32 %v342, 7
    %v344 = vsub.s32 0, %v343
    %v345 = vrot.slane %v340, %v344
    %v347 = vadd.f32 %v278, %v345
    %v348 = vadd.f32 %v281, %v345
    %v349 = vadd.f32 %v286, %v345
    %v350 = vadd.f32 %v289, %v345
    %v351 = vadd.f32 %v294, %v345
    %v352 = vadd.f32 %v297, %v345
    %v353 = vadd.f32 %v302, %v345
    %v354 = vadd.f32 %v305, %v345
    %v355 = vadd.f32 %v310, %v345
    %v356 = vadd.f32 %v313, %v345
    %v357 = vadd.f32 %v318, %v345
    %v358 = vadd.f32 %v321, %v345
    %v359 = vadd.f32 %v326, %v345
    %v360 = vadd.f32 %v329, %v345
    %v361 = vadd.f32 %v334, %v345
    %v362 = vadd.f32 %v337, %v345
    %v363 = vmax.f32 %v347, 0.0
    %v364 = vmax.f32 %v348, 0.0
    %v365 = vmax.f32 %v349, 0.0
    %v366 = vmax.f32 %v350, 0.0
    %v367 = vmax.f32 %v351, 0.0
    %v368 = vmax.f32 %v352, 0.0
    %v369 = vmax.f32 %v353, 0.0
    %v370 = vmax.f32 %v354, 0.0
    %v371 = vmax.f32 %v355, 0.0
    %v372 = vmax.f32 %v356, 0.0
    %v373 = vmax.f32 %v357, 0.0
    %v374 = vmax.f32 %v358, 0.0
    %v375 = vmax.f32 %v359, 0.0
    %v376 = vmax.f32 %v360, 0.0
    %v377 = vmax.f32 %v361, 0.0
    %v378 = vmax.f32 %v362, 0.0
    %v379 = vpack.c.bf16 %v364, %v363
    %v380 = vpack.c.bf16 %v366, %v365
    %v381 = vpack.c.bf16 %v368, %v367
    %v382 = vpack.c.bf16 %v370, %v369
    %v383 = vpack.c.bf16 %v372, %v371
    %v384 = vpack.c.bf16 %v374, %v373
    %v385 = vpack.c.bf16 %v376, %v375
    %v386 = vpack.c.bf16 %v378, %v377
    %v387 = vld [vmem:[%s5] sm:$0xf]
    %v388 = vld [vmem:[%s5 + $0x4] sm:$0xf]
    %v389 = vld [vmem:[%s5 + $0x8] sm:$0xf]
    %v390 = vld [vmem:[%s5 + $0xc] sm:$0xf]
    %v391 = vld [vmem:[%s5 + $0x10] sm:$0xf]
    %v392 = vld [vmem:[%s5 + $0x14] sm:$0xf]
    %v393 = vld [vmem:[%s5 + $0x18] sm:$0xf]
    %v394 = vld [vmem:[%s5 + $0x1c] sm:$0xf]
    %v395 = vld [vmem:[%s5 + $0x20] sm:$0xf]
    %v396 = vld [vmem:[%s5 + $0x24] sm:$0xf]
    %v397 = vld [vmem:[%s5 + $0x28] sm:$0xf]
    %v398 = vld [vmem:[%s5 + $0x2c] sm:$0xf]
    %v399 = vld [vmem:[%s5 + $0x30] sm:$0xf]
    %v400 = vld [vmem:[%s5 + $0x34] sm:$0xf]
    %v401 = vld [vmem:[%s5 + $0x38] sm:$0xf]
    %v402 = vld [vmem:[%s5 + $0x3c] sm:$0xf]
    %v403 = vld [vmem:[%s6] sm:$0x1]
    %v405 = vlaneseq
    %v406 = vshrl.u32 %v405, 7
    %v407 = vsub.s32 0, %v406
    %v408 = vrot.slane %v403, %v407
    %v426 = vunpack.c.l.b16 %v387
    %v427 = vunpack.c.l.b16 %v388
    %v428 = vunpack.c.l.b16 %v389
    %v429 = vunpack.c.l.b16 %v390
    %v430 = vunpack.c.l.b16 %v391
    %v431 = vunpack.c.l.b16 %v392
    %v432 = vunpack.c.l.b16 %v393
    %v433 = vunpack.c.l.b16 %v394
    %v434 = vunpack.c.l.b16 %v395
    %v435 = vunpack.c.l.b16 %v396
    %v436 = vunpack.c.l.b16 %v397
    %v437 = vunpack.c.l.b16 %v398
    %v438 = vunpack.c.l.b16 %v399
    %v439 = vunpack.c.l.b16 %v400
    %v440 = vunpack.c.l.b16 %v401
    %v441 = vunpack.c.l.b16 %v402
    %v442 = vpack.c.b16 %v427, %v426
    %v443 = vpack.c.b16 %v429, %v428
    %v444 = vpack.c.b16 %v431, %v430
    %v445 = vpack.c.b16 %v433, %v432
    %v446 = vpack.c.b16 %v435, %v434
    %v447 = vpack.c.b16 %v437, %v436
    %v448 = vpack.c.b16 %v439, %v438
    %v449 = vpack.c.b16 %v441, %v440
    %458 = vmatprep.subr.bf16.mxu0 0
    %459 = vmatpush1.bf16.msra.mxu0 %v442
    %460 = vmatprep.subr.bf16.mxu0 0
    %461 = vmatpush1.bf16.msra.mxu0 %v443
    %462 = vmatprep.subr.bf16.mxu0 0
    %463 = vmatpush1.bf16.msra.mxu0 %v444
    %464 = vmatprep.subr.bf16.mxu0 0
    %465 = vmatpush1.bf16.msra.mxu0 %v445
    %466 = vmatprep.subr.bf16.mxu0 0
    %467 = vmatpush1.bf16.msra.mxu0 %v446
    %468 = vmatprep.subr.bf16.mxu0 0
    %469 = vmatpush1.bf16.msra.mxu0 %v447
    %470 = vmatprep.subr.bf16.mxu0 0
    %471 = vmatpush1.bf16.msra.mxu0 %v448
    %472 = vmatprep.subr.bf16.mxu0 0
    %473 = vmatpush1.bf16.msra.mxu0 %v449
    %474 = vmatprep.subr.bf16.mxu0 0
    %475 = vmatpush1.bf16.msra.mxu0 0
    %476 = vmatprep.subr.bf16.mxu0 0
    %477 = vmatpush1.bf16.msra.mxu0 0
    %478 = vmatprep.subr.bf16.mxu0 0
    %479 = vmatpush1.bf16.msra.mxu0 0
    %480 = vmatprep.subr.bf16.mxu0 0
    %481 = vmatpush1.bf16.msra.mxu0 0
    %482 = vmatprep.subr.bf16.mxu0 0
    %483 = vmatpush1.bf16.msra.mxu0 0
    %484 = vmatprep.subr.bf16.mxu0 0
    %485 = vmatpush1.bf16.msra.mxu0 0
    %486 = vmatprep.subr.bf16.mxu0 0
    %487 = vmatpush1.bf16.msra.mxu0 0
    %488 = vmatprep.subr.bf16.mxu0 0
    %489 = vmatpush1.bf16.msra.mxu0 0
    %490 = vmatprep.mubr.bf16.mxu0 0
    %491 = vmatmul.mubr.bf16.gmra.mrb[0].mxu0 %v379
    %v492 = vpop.f32.mrb[0].mxu0
    %v493 = vadd.f32 %v408, %v492
    %v494 = vpop.f32.mrb[0].mxu0
    %v495 = vpop.f32.mrb[0].mxu0
    %v496 = vadd.f32 %v408, %v495
    %v497 = vpop.f32.mrb[0].mxu0
    %498 = vmatprep.mubr.bf16.mxu0 0
    %499 = vmatmul.mubr.bf16.gmra.mrb[0].mxu0 %v380
    %v500 = vpop.f32.mrb[0].mxu0
    %v501 = vadd.f32 %v408, %v500
    %v502 = vpop.f32.mrb[0].mxu0
    %v503 = vpop.f32.mrb[0].mxu0
    %v504 = vadd.f32 %v408, %v503
    %v505 = vpop.f32.mrb[0].mxu0
    %506 = vmatprep.mubr.bf16.mxu0 0
    %507 = vmatmul.mubr.bf16.gmra.mrb[0].mxu0 %v381
    %v508 = vpop.f32.mrb[0].mxu0
    %v509 = vadd.f32 %v408, %v508
    %v510 = vpop.f32.mrb[0].mxu0
    %v511 = vpop.f32.mrb[0].mxu0
    %v512 = vadd.f32 %v408, %v511
    %v513 = vpop.f32.mrb[0].mxu0
    %514 = vmatprep.mubr.bf16.mxu0 0
    %515 = vmatmul.mubr.bf16.gmra.mrb[0].mxu0 %v382
    %v516 = vpop.f32.mrb[0].mxu0
    %v517 = vadd.f32 %v408, %v516
    %v518 = vpop.f32.mrb[0].mxu0
    %v519 = vpop.f32.mrb[0].mxu0
    %v520 = vadd.f32 %v408, %v519
    %v521 = vpop.f32.mrb[0].mxu0
    %522 = vmatprep.mubr.bf16.mxu0 0
    %523 = vmatmul.mubr.bf16.gmra.mrb[0].mxu0 %v383
    %v524 = vpop.f32.mrb[0].mxu0
    %v525 = vadd.f32 %v408, %v524
    %v526 = vpop.f32.mrb[0].mxu0
    %v527 = vpop.f32.mrb[0].mxu0
    %v528 = vadd.f32 %v408, %v527
    %v529 = vpop.f32.mrb[0].mxu0
    %530 = vmatprep.mubr.bf16.mxu0 0
    %531 = vmatmul.mubr.bf16.gmra.mrb[0].mxu0 %v384
    %v532 = vpop.f32.mrb[0].mxu0
    %v533 = vadd.f32 %v408, %v532
    %v534 = vpop.f32.mrb[0].mxu0
    %v535 = vpop.f32.mrb[0].mxu0
    %v536 = vadd.f32 %v408, %v535
    %v537 = vpop.f32.mrb[0].mxu0
    %538 = vmatprep.mubr.bf16.mxu0 0
    %539 = vmatmul.mubr.bf16.gmra.mrb[0].mxu0 %v385
    %v540 = vpop.f32.mrb[0].mxu0
    %v541 = vadd.f32 %v408, %v540
    %v542 = vpop.f32.mrb[0].mxu0
    %v543 = vpop.f32.mrb[0].mxu0
    %v544 = vadd.f32 %v408, %v543
    %v545 = vpop.f32.mrb[0].mxu0
    %546 = vmatprep.mubr.bf16.mxu0 0
    %547 = vmatmul.mubr.bf16.gmra.mrb[0].mxu0 %v386
    %v548 = vpop.f32.mrb[0].mxu0
    %v549 = vadd.f32 %v408, %v548
    %v550 = vpop.f32.mrb[0].mxu0
    %v551 = vpop.f32.mrb[0].mxu0
    %v552 = vadd.f32 %v408, %v551
    %v553 = vpop.f32.mrb[0].mxu0
    %554 = vdwg.mxu0
    %v555 = vmax.f32 %v493, 0.0
    %v556 = vmax.f32 %v496, 0.0
    %v557 = vmax.f32 %v501, 0.0
    %v558 = vmax.f32 %v504, 0.0
    %v559 = vmax.f32 %v509, 0.0
    %v560 = vmax.f32 %v512, 0.0
    %v561 = vmax.f32 %v517, 0.0
    %v562 = vmax.f32 %v520, 0.0
    %v563 = vmax.f32 %v525, 0.0
    %v564 = vmax.f32 %v528, 0.0
    %v565 = vmax.f32 %v533, 0.0
    %v566 = vmax.f32 %v536, 0.0
    %v567 = vmax.f32 %v541, 0.0
    %v568 = vmax.f32 %v544, 0.0
    %v569 = vmax.f32 %v549, 0.0
    %v570 = vmax.f32 %v552, 0.0
    %v571 = vld [vmem:[%s7] sm:$0x1]
    %v573 = vlaneseq
    %v574 = vshrl.u32 %v573, 7
    %v575 = vsub.s32 0, %v574
    %v576 = vrot.slane %v571, %v575
    %v578 = vmul.f32 %v555, %v576
    %v579 = vmul.f32 %v556, %v576
    %v580 = vmul.f32 %v557, %v576
    %v581 = vmul.f32 %v558, %v576
    %v582 = vmul.f32 %v559, %v576
    %v583 = vmul.f32 %v560, %v576
    %v584 = vmul.f32 %v561, %v576
    %v585 = vmul.f32 %v562, %v576
    %v586 = vmul.f32 %v563, %v576
    %v587 = vmul.f32 %v564, %v576
    %v588 = vmul.f32 %v565, %v576
    %v589 = vmul.f32 %v566, %v576
    %v590 = vmul.f32 %v567, %v576
    %v591 = vmul.f32 %v568, %v576
    %v592 = vmul.f32 %v569, %v576
    %v593 = vmul.f32 %v570, %v576
    %594 = vadd.xlane.f32.xlu0 %v578
    %v595 = vpop.xlane.xlu0 %594
    %596 = vadd.xlane.f32.xlu0 %v579
    %v597 = vpop.xlane.xlu0 %596
    %598 = vadd.xlane.f32.xlu0 %v580
    %v599 = vpop.xlane.xlu0 %598
    %600 = vadd.xlane.f32.xlu0 %v581
    %v601 = vpop.xlane.xlu0 %600
    %602 = vadd.xlane.f32.xlu0 %v582
    %v603 = vpop.xlane.xlu0 %602
    %604 = vadd.xlane.f32.xlu0 %v583
    %v605 = vpop.xlane.xlu0 %604
    %606 = vadd.xlane.f32.xlu0 %v584
    %v607 = vpop.xlane.xlu0 %606
    %608 = vadd.xlane.f32.xlu0 %v585
    %v609 = vpop.xlane.xlu0 %608
    %610 = vadd.xlane.f32.xlu0 %v586
    %v611 = vpop.xlane.xlu0 %610
    %612 = vadd.xlane.f32.xlu0 %v587
    %v613 = vpop.xlane.xlu0 %612
    %614 = vadd.xlane.f32.xlu0 %v588
    %v615 = vpop.xlane.xlu0 %614
    %616 = vadd.xlane.f32.xlu0 %v589
    %v617 = vpop.xlane.xlu0 %616
    %618 = vadd.xlane.f32.xlu0 %v590
    %v619 = vpop.xlane.xlu0 %618
    %620 = vadd.xlane.f32.xlu0 %v591
    %v621 = vpop.xlane.xlu0 %620
    %622 = vadd.xlane.f32.xlu0 %v592
    %v623 = vpop.xlane.xlu0 %622
    %624 = vadd.xlane.f32.xlu0 %v593
    %v625 = vpop.xlane.xlu0 %624
    %s626 = sld [smem:[#allocation2]]
    %v627 = vstv %s626
    %v628 = vadd.f32 %v595, %v627
    %v629 = vadd.f32 %v597, %v627
    %v630 = vadd.f32 %v599, %v627
    %v631 = vadd.f32 %v601, %v627
    %v632 = vadd.f32 %v603, %v627
    %v633 = vadd.f32 %v605, %v627
    %v634 = vadd.f32 %v607, %v627
    %v635 = vadd.f32 %v609, %v627
    %v636 = vadd.f32 %v611, %v627
    %v637 = vadd.f32 %v613, %v627
    %v638 = vadd.f32 %v615, %v627
    %v639 = vadd.f32 %v617, %v627
    %v640 = vadd.f32 %v619, %v627
    %v641 = vadd.f32 %v621, %v627
    %v642 = vadd.f32 %v623, %v627
    %v643 = vadd.f32 %v625, %v627
    %v660 = vlaneseq
    %v661 = vand.u32 %v660, 127
    %v662 = vlaneseq
    %v663 = vshrl.u32 %v662, 7
    %v664 = vsub.s32 %v661, %v663
    %v665 = vrot.slane %v628, %v664
    %v666 = vadd.s32 %v661, 4294967288
    %v667 = vlaneseq
    %v668 = vshrl.u32 %v667, 7
    %v669 = vsub.s32 %v666, %v668
    %v670 = vrot.slane %v629, %v669
    %vm671 = vcmask 130112
    %v672 = vsel %vm671, %v670, %v665
    %v673 = vadd.s32 %v661, 4294967280
    %v674 = vlaneseq
    %v675 = vshrl.u32 %v674, 7
    %v676 = vsub.s32 %v673, %v675
    %v677 = vrot.slane %v630, %v676
    %vm678 = vcmask 195712
    %v679 = vsel %vm678, %v677, %v672
    %v680 = vadd.s32 %v661, 4294967272
    %v681 = vlaneseq
    %v682 = vshrl.u32 %v681, 7
    %v683 = vsub.s32 %v680, %v682
    %v684 = vrot.slane %v631, %v683
    %vm685 = vcmask 261312
    %v686 = vsel %vm685, %v684, %v679
    %v687 = vadd.s32 %v661, 4294967264
    %v688 = vlaneseq
    %v689 = vshrl.u32 %v688, 7
    %v690 = vsub.s32 %v687, %v689
    %v691 = vrot.slane %v632, %v690
    %vm692 = vcmask 326912
    %v693 = vsel %vm692, %v691, %v686
    %v694 = vadd.s32 %v661, 4294967256
    %v695 = vlaneseq
    %v696 = vshrl.u32 %v695, 7
    %v697 = vsub.s32 %v694, %v696
    %v698 = vrot.slane %v633, %v697
    %vm699 = vcmask 392512
    %v700 = vsel %vm699, %v698, %v693
    %v701 = vadd.s32 %v661, 4294967248
    %v702 = vlaneseq
    %v703 = vshrl.u32 %v702, 7
    %v704 = vsub.s32 %v701, %v703
    %v705 = vrot.slane %v634, %v704
    %vm706 = vcmask 458112
    %v707 = vsel %vm706, %v705, %v700
    %v708 = vadd.s32 %v661, 4294967240
    %v709 = vlaneseq
    %v710 = vshrl.u32 %v709, 7
    %v711 = vsub.s32 %v708, %v710
    %v712 = vrot.slane %v635, %v711
    %vm713 = vcmask 523712
    %v714 = vsel %vm713, %v712, %v707
    %v715 = vadd.s32 %v661, 4294967232
    %v716 = vlaneseq
    %v717 = vshrl.u32 %v716, 7
    %v718 = vsub.s32 %v715, %v717
    %v719 = vrot.slane %v636, %v718
    %vm720 = vcmask 589312
    %v721 = vsel %vm720, %v719, %v714
    %v722 = vadd.s32 %v661, 4294967224
    %v723 = vlaneseq
    %v724 = vshrl.u32 %v723, 7
    %v725 = vsub.s32 %v722, %v724
    %v726 = vrot.slane %v637, %v725
    %vm727 = vcmask 654912
    %v728 = vsel %vm727, %v726, %v721
    %v729 = vadd.s32 %v661, 4294967216
    %v730 = vlaneseq
    %v731 = vshrl.u32 %v730, 7
    %v732 = vsub.s32 %v729, %v731
    %v733 = vrot.slane %v638, %v732
    %vm734 = vcmask 720512
    %v735 = vsel %vm734, %v733, %v728
    %v736 = vadd.s32 %v661, 4294967208
    %v737 = vlaneseq
    %v738 = vshrl.u32 %v737, 7
    %v739 = vsub.s32 %v736, %v738
    %v740 = vrot.slane %v639, %v739
    %vm741 = vcmask 786112
    %v742 = vsel %vm741, %v740, %v735
    %v743 = vadd.s32 %v661, 4294967200
    %v744 = vlaneseq
    %v745 = vshrl.u32 %v744, 7
    %v746 = vsub.s32 %v743, %v745
    %v747 = vrot.slane %v640, %v746
    %vm748 = vcmask 851712
    %v749 = vsel %vm748, %v747, %v742
    %v750 = vadd.s32 %v661, 4294967192
    %v751 = vlaneseq
    %v752 = vshrl.u32 %v751, 7
    %v753 = vsub.s32 %v750, %v752
    %v754 = vrot.slane %v641, %v753
    %vm755 = vcmask 917312
    %v756 = vsel %vm755, %v754, %v749
    %v757 = vadd.s32 %v661, 4294967184
    %v758 = vlaneseq
    %v759 = vshrl.u32 %v758, 7
    %v760 = vsub.s32 %v757, %v759
    %v761 = vrot.slane %v642, %v760
    %vm762 = vcmask 982912
    %v763 = vsel %vm762, %v761, %v756
    %v764 = vadd.s32 %v661, 4294967176
    %v765 = vlaneseq
    %v766 = vshrl.u32 %v765, 7
    %v767 = vsub.s32 %v764, %v766
    %v768 = vrot.slane %v643, %v767
    %vm769 = vcmask 1048512
    %v770 = vsel %vm769, %v768, %v763
    %772 = vst [vmem:[#allocation3] sm:$0x1] %v770
    // Predicated region
    $region38: #{tpu_custom_call.1} parent=1 // pred_check
      _
    $region39: #{tpu_custom_call.1} parent=1 // pred_check_branch
      %774 = sbr.rel (0) target = $region41
    $region40: #{tpu_custom_call.1} parent=1 // pred_region
      %s776 = ssub.s32 16, 16
      %777 = vsyncadd [#allocation4], %s776
      %s779 = sshll.u32 [#allocation3], 4
      %s780 = int_to_ptr.vmem [resolvable:$true] %s779
      %782 = dma.vmem_to_hbm [thread:$0]  %s780, 16, %s9, [#allocation4]
    $region41: #{tpu_custom_call.1} parent=1 // pred_fallthru
      _
    // Predicated region
    $region42: #{tpu_custom_call.1} parent=1 // pred_check
      _
    $region43: #{tpu_custom_call.1} parent=1 // pred_check_branch
      %784 = sbr.rel (0) target = $region45
    $region44: #{tpu_custom_call.1} parent=1 // pred_region
      %785 = dma.done [#allocation4], 16
    $region45: #{tpu_custom_call.1} parent=1 // pred_fallthru
      _
    %786 = vsyncpa [#allocation4], 1

</llo_original>
